<compile_context>
chip_gen: v7x
topology: tpu7x:2x2x1
jax: 0.10.0
libtpu: 0.0.40
codegen_flags: <defaults>
</compile_context>

<pallas_src>
import math
import functools

import jax
import jax.numpy as jnp
from jax import lax
from jax.experimental import pallas as pl
from jax.experimental.pallas import tpu as pltpu


_VMEM_LIMIT = 64 * 1024 * 1024  # re-tune per chip; 64 MiB fits v7x physical VMEM.


def _qkv_proj_kernel(q_ref, k_ref, v_ref,
                     wq_ref, bq_ref, wk_ref, bk_ref, wv_ref, bv_ref,
                     qo_ref, ko_ref, vo_ref, *, scale):
    """Fused Q/K/V projection for one tile of flattened tokens.

    x_ref: (tm, D); w*_ref: (D, D) in PyTorch (out, in); b*_ref: (1, D) f32.
    Outputs are stored in the compute dtype; Q is pre-scaled by 1/sqrt(hd).
    """
    cdims = (((1,), (1,)), ((), ()))   # contract x features with W's `in` dim

    def linear(x_ref, w_ref, b_ref):
        x = x_ref[...].astype(w_ref.dtype)
        y = lax.dot_general(x, w_ref[...], cdims,
                            preferred_element_type=jnp.float32)
        return y + b_ref[...]

    qo_ref[...] = (linear(q_ref, wq_ref, bq_ref) * scale).astype(qo_ref.dtype)
    ko_ref[...] = linear(k_ref, wk_ref, bk_ref).astype(ko_ref.dtype)
    vo_ref[...] = linear(v_ref, wv_ref, bv_ref).astype(vo_ref.dtype)


def _flash_attn_kernel(q_ref, k_ref, v_ref, wo_ref, bo_ref, o_ref,
                       m_ref, l_ref, acc_ref, ctx_ref,
                       *, num_heads, head_dim):
    """One grid step (batch b, q tile qi, kv tile ki), online softmax.

    q_ref: (tq, D) projected & pre-scaled; k_ref / v_ref: (tk, D) projected.
    wo_ref: (D, D) (out, in); bo_ref: (1, D) f32; o_ref: (tq, D).
    m_ref / l_ref: (H, tq, 1) f32; acc_ref: (H, tq, hd) f32; ctx_ref: (tq, D).
    """
    ki = pl.program_id(2)
    nk = pl.num_programs(2)

    @pl.when(ki == 0)
    def _init():
        m_ref[...] = jnp.full(m_ref.shape, -jnp.inf, dtype=m_ref.dtype)
        l_ref[...] = jnp.zeros(l_ref.shape, dtype=l_ref.dtype)
        acc_ref[...] = jnp.zeros(acc_ref.shape, dtype=acc_ref.dtype)

    # Per-head online-softmax update (num_heads is small & static).  For large
    # H, switch to lax.fori_loop(unroll=2) if the bundle dump shows vreg spills.
    for h in range(num_heads):
        lo, hi = h * head_dim, (h + 1) * head_dim
        Qh = q_ref[:, lo:hi]          # (tq, hd), already scaled
        Kh = k_ref[:, lo:hi]          # (tk, hd)
        Vh = v_ref[:, lo:hi]          # (tk, hd)

        # Q K^T without materializing a transpose: contract the last dims.
        s = lax.dot_general(Qh, Kh, (((1,), (1,)), ((), ())),
                            preferred_element_type=jnp.float32)   # (tq, tk)

        m_prev = m_ref[h]                                          # (tq, 1)
        m_new = jnp.maximum(m_prev, jnp.max(s, axis=-1, keepdims=True))
        alpha = jnp.exp(m_prev - m_new)
        p = jnp.exp(s - m_new)                                     # (tq, tk) f32
        l_ref[h] = alpha * l_ref[h] + jnp.sum(p, axis=-1, keepdims=True)
        acc_ref[h] = alpha * acc_ref[h] + jnp.dot(
            p.astype(v_ref.dtype), Vh, preferred_element_type=jnp.float32)
        m_ref[h] = m_new

    # Finalize: normalize each head into one (tq, D) buffer, then a single
    # (tq, D) @ (D, D) output projection (lane-dense store, full-D contraction).
    @pl.when(ki == nk - 1)
    def _finalize():
        for h in range(num_heads):
            lo, hi = h * head_dim, (h + 1) * head_dim
            ctx_ref[:, lo:hi] = (acc_ref[h] / l_ref[h]).astype(ctx_ref.dtype)
        out = lax.dot_general(ctx_ref[...], wo_ref[...],
                              (((1,), (1,)), ((), ())),
                              preferred_element_type=jnp.float32)
        o_ref[...] = (out + bo_ref[...]).astype(o_ref.dtype)


def multihead_attention(query, key, value, params, *, num_heads,
                        tm=None, tq=None, tk=None, compute_dtype=None):
    """params: dict with wq, bq, wk, bk, wv, bv, wo, bo.
    w* are (d_model, d_model) in PyTorch (out, in) convention; b* are (d_model,).
    compute_dtype: MXU operand dtype (default = input dtype; use jnp.bfloat16
    for peak MXU throughput with f32 accumulation).
    """
    B, S, D = query.shape
    assert D % num_heads == 0, "d_model must be divisible by num_heads"
    head_dim = D // num_heads
    out_dtype = query.dtype
    compute_dtype = out_dtype if compute_dtype is None else compute_dtype

    # Tile sizes: 256 suits the 2x256 MXUs of v6e/v7x; pass 128 on v5e.
    tq = min(S, 256) if tq is None else tq
    tk = min(S, 256) if tk is None else tk
    BS = B * S
    tm = min(BS, 256) if tm is None else tm
    assert S % tq == 0 and S % tk == 0 and BS % tm == 0
    nq, nk, nm = S // tq, S // tk, BS // tm

    # Weights keep the PyTorch (out, in) layout — no wrapper-side transposes.
    # Cast is a no-op when dtypes already match.
    wq = params["wq"].astype(compute_dtype)
    wk = params["wk"].astype(compute_dtype)
    wv = params["wv"].astype(compute_dtype)
    wo = params["wo"].astype(compute_dtype)
    bq = params["bq"].reshape(1, D).astype(jnp.float32)
    bk = params["bk"].reshape(1, D).astype(jnp.float32)
    bv = params["bv"].reshape(1, D).astype(jnp.float32)
    bo = params["bo"].reshape(1, D).astype(jnp.float32)

    # Grid-invariant operands: whole array resident in VMEM once
    # (no double-buffered (D, D) pipeline buffers).
    vmem_spec = pl.BlockSpec(memory_space=pltpu.MemorySpace.VMEM)

    # ---- 1) fused Q/K/V projection over flattened tokens -------------------
    qf = query.reshape(BS, D)
    kf = key.reshape(BS, D)
    vf = value.reshape(BS, D)
    x_spec = pl.BlockSpec((tm, D), lambda i: (i, 0))

    proj = pl.pallas_call(
        functools.partial(_qkv_proj_kernel, scale=1.0 / math.sqrt(head_dim)),
        out_shape=(jax.ShapeDtypeStruct((BS, D), compute_dtype),
                   jax.ShapeDtypeStruct((BS, D), compute_dtype),
                   jax.ShapeDtypeStruct((BS, D), compute_dtype)),
        grid_spec=pltpu.PrefetchScalarGridSpec(
            num_scalar_prefetch=0,
            grid=(nm,),
            in_specs=[x_spec, x_spec, x_spec,
                      vmem_spec, vmem_spec, vmem_spec,
                      vmem_spec, vmem_spec, vmem_spec],
            out_specs=(x_spec, x_spec, x_spec)),
        compiler_params=pltpu.CompilerParams(
            dimension_semantics=("parallel",),
            vmem_limit_bytes=_VMEM_LIMIT),
    )
    Qp, Kp, Vp = proj(qf, kf, vf, wq, bq, wk, bk, wv, bv)
    Qp = Qp.reshape(B, S, D)
    Kp = Kp.reshape(B, S, D)
    Vp = Vp.reshape(B, S, D)

    # ---- 2) flash attention + fused output projection -----------------------
    q_spec = pl.BlockSpec((None, tq, D), lambda b, qi, ki: (b, qi, 0))
    kv_spec = pl.BlockSpec((None, tk, D), lambda b, qi, ki: (b, ki, 0))
    o_spec = pl.BlockSpec((None, tq, D), lambda b, qi, ki: (b, qi, 0))

    attn = pl.pallas_call(
        functools.partial(_flash_attn_kernel, num_heads=num_heads,
                          head_dim=head_dim),
        out_shape=jax.ShapeDtypeStruct((B, S, D), out_dtype),
        grid_spec=pltpu.PrefetchScalarGridSpec(
            num_scalar_prefetch=0,
            grid=(B, nq, nk),                       # KV reduction axis last
            in_specs=[q_spec, kv_spec, kv_spec, vmem_spec, vmem_spec],
            out_specs=o_spec,
            scratch_shapes=[
                pltpu.VMEM((num_heads, tq, 1), jnp.float32),         # running max m
                pltpu.VMEM((num_heads, tq, 1), jnp.float32),         # running sum l
                pltpu.VMEM((num_heads, tq, head_dim), jnp.float32),  # running acc
                pltpu.VMEM((tq, D), compute_dtype),                  # context buffer
            ]),
        compiler_params=pltpu.CompilerParams(
            dimension_semantics=("parallel", "parallel", "arbitrary"),
            vmem_limit_bytes=_VMEM_LIMIT),
    )
    return attn(Qp, Kp, Vp, wo, bo)


def _reference(query, key, value, params, *, num_heads):
    B, S, D = query.shape
    dim = D // num_heads

    def lin(x, w, b):
        return jnp.einsum("bsd,od->bso", x, w) + b

    Q = lin(query, params["wq"], params["bq"]).reshape(B, S, num_heads, dim).transpose(0, 2, 1, 3)
    K = lin(key, params["wk"], params["bk"]).reshape(B, S, num_heads, dim).transpose(0, 2, 1, 3)
    V = lin(value, params["wv"], params["bv"]).reshape(B, S, num_heads, dim).transpose(0, 2, 1, 3)

    scores = jnp.einsum("bhqd,bhkd->bhqk", Q, K) / math.sqrt(dim)
    attn = jax.nn.softmax(scores, axis=-1)
    ctx = jnp.einsum("bhqk,bhkd->bhqd", attn, V)
    ctx = ctx.transpose(0, 2, 1, 3).reshape(B, S, D)
    return jnp.einsum("bsd,od->bso", ctx, params["wo"]) + params["bo"]


if __name__ == "__main__":
    # Small shapes; tiles chosen so multi-tile online-softmax accumulation and
    # the pipelined projection grid are actually exercised (nq=nk=2, nm=4).
    B, S, D, H = 2, 16, 32, 4
    key0 = jax.random.PRNGKey(0)
    keys = jax.random.split(key0, 11)

    bound = 1.0 / math.sqrt(D)
    params = {
        "wq": jax.random.uniform(keys[0], (D, D), jnp.float32, -bound, bound),
        "bq": jax.random.uniform(keys[1], (D,), jnp.float32, -bound, bound),
        "wk": jax.random.uniform(keys[2], (D, D), jnp.float32, -bound, bound),
        "bk": jax.random.uniform(keys[3], (D,), jnp.float32, -bound, bound),
        "wv": jax.random.uniform(keys[4], (D, D), jnp.float32, -bound, bound),
        "bv": jax.random.uniform(keys[5], (D,), jnp.float32, -bound, bound),
        "wo": jax.random.uniform(keys[6], (D, D), jnp.float32, -bound, bound),
        "bo": jax.random.uniform(keys[7], (D,), jnp.float32, -bound, bound),
    }

    query = jax.random.normal(keys[8], (B, S, D), jnp.float32)
    key_in = jax.random.normal(keys[9], (B, S, D), jnp.float32)
    value = jax.random.normal(keys[10], (B, S, D), jnp.float32)

    out = multihead_attention(query, key_in, value, params, num_heads=H,
                              tm=8, tq=8, tk=8)
    out = jax.block_until_ready(out)

    ref = _reference(query, key_in, value, params, num_heads=H)
    assert out.shape == (B, S, D)
    max_err = float(jnp.max(jnp.abs(out - ref)))
    assert jnp.allclose(out, ref, atol=1e-3, rtol=1e-3), max_err

    print("KERNEL_OK")
</pallas_src>

<mosaic_0001>
module attributes {stable_mosaic.version = 11 : i64} {
  func.func @_qkv_proj_kernel(%arg0: i32, %arg1: memref<8x32xf32, #tpu.memory_space<vmem>>, %arg2: memref<8x32xf32, #tpu.memory_space<vmem>>, %arg3: memref<8x32xf32, #tpu.memory_space<vmem>>, %arg4: memref<32x32xf32, #tpu.memory_space<vmem>>, %arg5: memref<1x32xf32, #tpu.memory_space<vmem>>, %arg6: memref<32x32xf32, #tpu.memory_space<vmem>>, %arg7: memref<1x32xf32, #tpu.memory_space<vmem>>, %arg8: memref<32x32xf32, #tpu.memory_space<vmem>>, %arg9: memref<1x32xf32, #tpu.memory_space<vmem>>, %arg10: memref<8x32xf32, #tpu.memory_space<vmem>>, %arg11: memref<8x32xf32, #tpu.memory_space<vmem>>, %arg12: memref<8x32xf32, #tpu.memory_space<vmem>>) attributes {dimension_semantics = [#tpu.dimension_semantics<parallel>], iteration_bounds = array<i64: 4>, scalar_prefetch = 0 : i64, scratch_operands = 0 : i64, tpu.core_type = #tpu.core_type<tc>, window_params = [{transform_indices = @transform_0, window_bounds = array<i64: 8, 32>}, {transform_indices = @transform_1, window_bounds = array<i64: 8, 32>}, {transform_indices = @transform_2, window_bounds = array<i64: 8, 32>}, {pipeline_mode = #tpu.pipeline_mode<synchronous>, transform_indices = @transform_3, window_bounds = array<i64: 32, 32>}, {pipeline_mode = #tpu.pipeline_mode<synchronous>, transform_indices = @transform_4, window_bounds = array<i64: 1, 32>}, {pipeline_mode = #tpu.pipeline_mode<synchronous>, transform_indices = @transform_5, window_bounds = array<i64: 32, 32>}, {pipeline_mode = #tpu.pipeline_mode<synchronous>, transform_indices = @transform_6, window_bounds = array<i64: 1, 32>}, {pipeline_mode = #tpu.pipeline_mode<synchronous>, transform_indices = @transform_7, window_bounds = array<i64: 32, 32>}, {pipeline_mode = #tpu.pipeline_mode<synchronous>, transform_indices = @transform_8, window_bounds = array<i64: 1, 32>}, {transform_indices = @transform_9, window_bounds = array<i64: 8, 32>}, {transform_indices = @transform_10, window_bounds = array<i64: 8, 32>}, {transform_indices = @transform_11, window_bounds = array<i64: 8, 32>}]} {
    %c0 = arith.constant 0 : index
    %c0_0 = arith.constant 0 : index
    %0 = vector.load %arg1[%c0, %c0_0] : memref<8x32xf32, #tpu.memory_space<vmem>>, vector<8x32xf32>
    %c0_1 = arith.constant 0 : index
    %c0_2 = arith.constant 0 : index
    %1 = vector.load %arg4[%c0_1, %c0_2] : memref<32x32xf32, #tpu.memory_space<vmem>>, vector<32x32xf32>
    %cst = arith.constant dense<0.000000e+00> : vector<8x32xf32>
    %2 = tpu.matmul %0, %1, %cst {dimension_numbers = #tpu.dot_dimension_numbers<[1], [1], [0], [0], [0, 0, 1, 0], [], []>} : vector<8x32xf32>, vector<32x32xf32>, vector<8x32xf32> -> vector<8x32xf32>
    %c0_3 = arith.constant 0 : index
    %c0_4 = arith.constant 0 : index
    %3 = vector.load %arg5[%c0_3, %c0_4] : memref<1x32xf32, #tpu.memory_space<vmem>>, vector<1x32xf32>
    %4 = vector.broadcast %3 : vector<1x32xf32> to vector<8x32xf32>
    %5 = arith.addf %2, %4 : vector<8x32xf32>
    %cst_5 = arith.constant 0.353553385 : f32
    %6 = vector.broadcast %cst_5 : f32 to vector<8x32xf32>
    %7 = arith.mulf %5, %6 : vector<8x32xf32>
    %c0_6 = arith.constant 0 : index
    %c0_7 = arith.constant 0 : index
    %8 = vector.load %arg10[%c0_6, %c0_7] : memref<8x32xf32, #tpu.memory_space<vmem>>, vector<8x32xf32>
    tpu.vector_store %arg10[%c0_6, %c0_7], %7 {strides = array<i32>} : memref<8x32xf32, #tpu.memory_space<vmem>>, vector<8x32xf32>,
    %c0_8 = arith.constant 0 : index
    %c0_9 = arith.constant 0 : index
    %9 = vector.load %arg2[%c0_8, %c0_9] : memref<8x32xf32, #tpu.memory_space<vmem>>, vector<8x32xf32>
    %c0_10 = arith.constant 0 : index
    %c0_11 = arith.constant 0 : index
    %10 = vector.load %arg6[%c0_10, %c0_11] : memref<32x32xf32, #tpu.memory_space<vmem>>, vector<32x32xf32>
    %cst_12 = arith.constant dense<0.000000e+00> : vector<8x32xf32>
    %11 = tpu.matmul %9, %10, %cst_12 {dimension_numbers = #tpu.dot_dimension_numbers<[1], [1], [0], [0], [0, 0, 1, 0], [], []>} : vector<8x32xf32>, vector<32x32xf32>, vector<8x32xf32> -> vector<8x32xf32>
    %c0_13 = arith.constant 0 : index
    %c0_14 = arith.constant 0 : index
    %12 = vector.load %arg7[%c0_13, %c0_14] : memref<1x32xf32, #tpu.memory_space<vmem>>, vector<1x32xf32>
    %13 = vector.broadcast %12 : vector<1x32xf32> to vector<8x32xf32>
    %14 = arith.addf %11, %13 : vector<8x32xf32>
    %c0_15 = arith.constant 0 : index
    %c0_16 = arith.constant 0 : index
    %15 = vector.load %arg11[%c0_15, %c0_16] : memref<8x32xf32, #tpu.memory_space<vmem>>, vector<8x32xf32>
    tpu.vector_store %arg11[%c0_15, %c0_16], %14 {strides = array<i32>} : memref<8x32xf32, #tpu.memory_space<vmem>>, vector<8x32xf32>,
    %c0_17 = arith.constant 0 : index
    %c0_18 = arith.constant 0 : index
    %16 = vector.load %arg3[%c0_17, %c0_18] : memref<8x32xf32, #tpu.memory_space<vmem>>, vector<8x32xf32>
    %c0_19 = arith.constant 0 : index
    %c0_20 = arith.constant 0 : index
    %17 = vector.load %arg8[%c0_19, %c0_20] : memref<32x32xf32, #tpu.memory_space<vmem>>, vector<32x32xf32>
    %cst_21 = arith.constant dense<0.000000e+00> : vector<8x32xf32>
    %18 = tpu.matmul %16, %17, %cst_21 {dimension_numbers = #tpu.dot_dimension_numbers<[1], [1], [0], [0], [0, 0, 1, 0], [], []>} : vector<8x32xf32>, vector<32x32xf32>, vector<8x32xf32> -> vector<8x32xf32>
    %c0_22 = arith.constant 0 : index
    %c0_23 = arith.constant 0 : index
    %19 = vector.load %arg9[%c0_22, %c0_23] : memref<1x32xf32, #tpu.memory_space<vmem>>, vector<1x32xf32>
    %20 = vector.broadcast %19 : vector<1x32xf32> to vector<8x32xf32>
    %21 = arith.addf %18, %20 : vector<8x32xf32>
    %c0_24 = arith.constant 0 : index
    %c0_25 = arith.constant 0 : index
    %22 = vector.load %arg12[%c0_24, %c0_25] : memref<8x32xf32, #tpu.memory_space<vmem>>, vector<8x32xf32>
    tpu.vector_store %arg12[%c0_24, %c0_25], %21 {strides = array<i32>} : memref<8x32xf32, #tpu.memory_space<vmem>>, vector<8x32xf32>,
    return
  }
  func.func @transform_0(%arg0: i32) -> (i32, i32) {
    %c0_i32 = arith.constant 0 : i32
    %c0_i32_0 = arith.constant 0 : i32
    return %arg0, %c0_i32 : i32, i32
  }
  func.func @transform_1(%arg0: i32) -> (i32, i32) {
    %c0_i32 = arith.constant 0 : i32
    %c0_i32_0 = arith.constant 0 : i32
    return %arg0, %c0_i32 : i32, i32
  }
  func.func @transform_2(%arg0: i32) -> (i32, i32) {
    %c0_i32 = arith.constant 0 : i32
    %c0_i32_0 = arith.constant 0 : i32
    return %arg0, %c0_i32 : i32, i32
  }
  func.func @transform_3(%arg0: i32) -> (i32, i32) {
    %c0_i32 = arith.constant 0 : i32
    %c0_i32_0 = arith.constant 0 : i32
    %c0_i32_1 = arith.constant 0 : i32
    return %c0_i32, %c0_i32_0 : i32, i32
  }
  func.func @transform_4(%arg0: i32) -> (i32, i32) {
    %c0_i32 = arith.constant 0 : i32
    %c0_i32_0 = arith.constant 0 : i32
    %c0_i32_1 = arith.constant 0 : i32
    return %c0_i32, %c0_i32_0 : i32, i32
  }
  func.func @transform_5(%arg0: i32) -> (i32, i32) {
    %c0_i32 = arith.constant 0 : i32
    %c0_i32_0 = arith.constant 0 : i32
    %c0_i32_1 = arith.constant 0 : i32
    return %c0_i32, %c0_i32_0 : i32, i32
  }
  func.func @transform_6(%arg0: i32) -> (i32, i32) {
    %c0_i32 = arith.constant 0 : i32
    %c0_i32_0 = arith.constant 0 : i32
    %c0_i32_1 = arith.constant 0 : i32
    return %c0_i32, %c0_i32_0 : i32, i32
  }
  func.func @transform_7(%arg0: i32) -> (i32, i32) {
    %c0_i32 = arith.constant 0 : i32
    %c0_i32_0 = arith.constant 0 : i32
    %c0_i32_1 = arith.constant 0 : i32
    return %c0_i32, %c0_i32_0 : i32, i32
  }
  func.func @transform_8(%arg0: i32) -> (i32, i32) {
    %c0_i32 = arith.constant 0 : i32
    %c0_i32_0 = arith.constant 0 : i32
    %c0_i32_1 = arith.constant 0 : i32
    return %c0_i32, %c0_i32_0 : i32, i32
  }
  func.func @transform_9(%arg0: i32) -> (i32, i32) {
    %c0_i32 = arith.constant 0 : i32
    %c0_i32_0 = arith.constant 0 : i32
    return %arg0, %c0_i32 : i32, i32
  }
  func.func @transform_10(%arg0: i32) -> (i32, i32) {
    %c0_i32 = arith.constant 0 : i32
    %c0_i32_0 = arith.constant 0 : i32
    return %arg0, %c0_i32 : i32, i32
  }
  func.func @transform_11(%arg0: i32) -> (i32, i32) {
    %c0_i32 = arith.constant 0 : i32
    %c0_i32_0 = arith.constant 0 : i32
    return %arg0, %c0_i32 : i32, i32
  }
}

</mosaic_0001>

<llo_original>
// kernel: tpu_custom_call.1
$region0: #{tpu_custom_call.1}
  #allocation0 [shape = 'u32[]', space=smem, size = 0x4, offset = 0x4, fixed_abs, tag = 'smem constant byte address 0x4 - core index']
  #allocation1 [shape = 'u32[144,128]{1,0:T(1,128)}', space=vmem, size = 0x12000, scoped, tag = 'internal scratch']
  %s0 = inlined_call_operand.hbm [shape: f32[32,32], index: 0, kind: input, shape index: {}]
  %s1 = inlined_call_operand.hbm [shape: f32[32,32], index: 1, kind: input, shape index: {}]
  %s2 = inlined_call_operand.hbm [shape: f32[32,32], index: 2, kind: input, shape index: {}]
  %s3 = inlined_call_operand.hbm [shape: f32[32,32], index: 3, kind: input, shape index: {}]
  %s4 = inlined_call_operand.hbm [shape: f32[1,32], index: 4, kind: input, shape index: {}]
  %s5 = inlined_call_operand.hbm [shape: f32[32,32], index: 5, kind: input, shape index: {}]
  %s6 = inlined_call_operand.hbm [shape: f32[1,32], index: 6, kind: input, shape index: {}]
  %s7 = inlined_call_operand.hbm [shape: f32[32,32], index: 7, kind: input, shape index: {}]
  %s8 = inlined_call_operand.hbm [shape: f32[1,32], index: 8, kind: input, shape index: {}]
  %s9 = inlined_call_operand.hbm [shape: f32[32,32], index: 9, kind: output, shape index: {0}]
  %s10 = inlined_call_operand.hbm [shape: f32[32,32], index: 10, kind: output, shape index: {1}]
  %s11 = inlined_call_operand.hbm [shape: f32[32,32], index: 11, kind: output, shape index: {2}]
  %12 = xla_tuple %s9, %s10, %s11
  %s13 = sld [smem:[#allocation0]]
  $region121: #{tpu_custom_call.1} parent=0
    _
  %s15 = ssub.s32 1, %s13
  %s16 = scalar_select 0, %s15, %s13
  $region1: #{tpu_custom_call.1} parent=0
    #allocation2 [shape = 'u8[8192]{0}', space=vmem, size = 0x2000, scoped, tag = 'input window, operand 0']
    #allocation3 [shape = 's32[2]{0}', space=sflag, size = 0x8, scoped, tag = 'scoped memory for tpu_custom_call.1']
    #allocation4 [shape = 's32[2]{0}', space=sflag, size = 0x8, scoped, tag = 'scoped memory for tpu_custom_call.1']
    #allocation5 [shape = 'u8[8192]{0}', space=vmem, size = 0x2000, scoped, tag = 'input window, operand 1']
    #allocation6 [shape = 's32[2]{0}', space=sflag, size = 0x8, scoped, tag = 'scoped memory for tpu_custom_call.1']
    #allocation7 [shape = 'u8[8192]{0}', space=vmem, size = 0x2000, scoped, tag = 'input window, operand 2']
    #allocation8 [shape = 'u8[16384]{0}', space=vmem, size = 0x4000, scoped, tag = 'input window, operand 3, single buffered']
    #allocation9 [shape = 's32[1]{0}', space=sflag, size = 0x4, scoped, tag = 'scoped memory for tpu_custom_call.1']
    #allocation10 [shape = 'u8[512]{0}', space=vmem, size = 0x400, scoped, tag = 'input window, operand 4, single buffered']
    #allocation11 [shape = 'u8[16384]{0}', space=vmem, size = 0x4000, scoped, tag = 'input window, operand 5, single buffered']
    #allocation12 [shape = 's32[1]{0}', space=sflag, size = 0x4, scoped, tag = 'scoped memory for tpu_custom_call.1']
    #allocation13 [shape = 'u8[512]{0}', space=vmem, size = 0x400, scoped, tag = 'input window, operand 6, single buffered']
    #allocation14 [shape = 'u8[16384]{0}', space=vmem, size = 0x4000, scoped, tag = 'input window, operand 7, single buffered']
    #allocation15 [shape = 's32[1]{0}', space=sflag, size = 0x4, scoped, tag = 'scoped memory for tpu_custom_call.1']
    #allocation16 [shape = 'u8[512]{0}', space=vmem, size = 0x400, scoped, tag = 'input window, operand 8, single buffered']
    #allocation17 [shape = 'u8[8192]{0}', space=vmem, size = 0x2000, scoped, tag = 'output window, operand 0']
    #allocation18 [shape = 'u8[8192]{0}', space=vmem, size = 0x2000, scoped, tag = 'output window, operand 1']
    #allocation19 [shape = 's32[2]{0}', space=sflag, size = 0x8, scoped, tag = 'scoped memory for tpu_custom_call.1']
    #allocation20 [shape = 'u8[8192]{0}', space=vmem, size = 0x2000, scoped, tag = 'output window, operand 2']
    %17 = vsyncpa [#allocation3], 0
    %s18 = scalar_lea.sflag [#allocation3], 1
    %19 = vsyncpa %s18, 0
    %20 = vsyncpa [#allocation6], 0
    %s21 = scalar_lea.sflag [#allocation6], 1
    %22 = vsyncpa %s21, 0
    %23 = vsyncpa [#allocation9], 0
    %24 = vsyncpa [#allocation12], 0
    %25 = vsyncpa [#allocation15], 0
    %26 = vsyncpa [#allocation4], 0
    %s27 = scalar_lea.sflag [#allocation4], 1
    %28 = vsyncpa %s27, 0
    %29 = vsyncpa [#allocation19], 0
    %s30 = scalar_lea.sflag [#allocation19], 1
    %31 = vsyncpa %s30, 0
    loop: start=0, step=1, limit=6
    $region2: #{tpu_custom_call.1} parent=1 // loop_pre_header
      _
    $region3: #{tpu_custom_call.1} parent=1 // loop_header
      %s33 = sphi 0, %s37
      %p34 = scmp.ge.s32.totalorder %s33, 6
      %s43 = sphi 0, %s45
      %s46 = sphi 0, %s43
      %s47 = sphi 0, %s46
      %s63 = sphi 0, %s47
      %s69 = sphi 0, %s71
      %s72 = sphi 0, %s69
      %s73 = sphi 0, %s72
      %s89 = sphi 0, %s73
      %s95 = sphi 0, %s97
      %s98 = sphi 0, %s95
      %s99 = sphi 0, %s98
      %s115 = sphi 0, %s99
      %s119 = sphi 0, %s119
      %s121 = sphi 0, %s119
      %s122 = sphi 0, %s121
      %s136 = sphi 0, %s122
      %s140 = sphi 0, %s140
      %s142 = sphi 0, %s140
      %s143 = sphi 0, %s142
      %s157 = sphi 0, %s143
      %s161 = sphi 0, %s161
      %s163 = sphi 0, %s161
      %s164 = sphi 0, %s163
      %s178 = sphi 0, %s164
      %s182 = sphi 0, %s182
      %s184 = sphi 0, %s182
      %s185 = sphi 0, %s184
      %s199 = sphi 0, %s185
      %s203 = sphi 0, %s203
      %s205 = sphi 0, %s203
      %s206 = sphi 0, %s205
      %s220 = sphi 0, %s206
      %s224 = sphi 0, %s224
      %s226 = sphi 0, %s224
      %s227 = sphi 0, %s226
      %s241 = sphi 0, %s227
      %s247 = sphi 0, %s249
      %s250 = sphi 0, %s247
      %s251 = sphi 0, %s250
      %s267 = sphi 0, %s251
      %s273 = sphi 0, %s275
      %s276 = sphi 0, %s273
      %s277 = sphi 0, %s276
      %s293 = sphi 0, %s277
      %s299 = sphi 0, %s301
      %s302 = sphi 0, %s299
      %s303 = sphi 0, %s302
      %s319 = sphi 0, %s303
    $region4: #{tpu_custom_call.1} parent=1 // loop_header_branch
      %36 = sbr.rel (%p34) target = $region8
    $region5: #{tpu_custom_call.1} parent=1 // loop_body
      %s38 = ssub.s32 %s33, 1
      %s39 = ssub.s32 %s33, 2
      %s40 = sadd.s32 %s33, 1
      %s41 = ssub.s32 %s33, %s40
      %p42 = scmp.eq.s32.totalorder %s41, 0
      %s44 = sadd.s32 %s43, 1
      %s45 = scalar_select %p42, %s43, %s44
      %p48 = pneg %p42
      %p49 = scmp.eq.s32.totalorder %s33, 3
      %p50 = por %p48, %p49
      %p51 = scmp.ne.s32.totalorder %s43, %s46
      %p52 = scmp.eq.s32.totalorder %s33, 0
      %p53 = por %p51, %p52
      %p54 = scmp.ne.s32.totalorder %s43, %s46
      %p55 = scmp.eq.s32.totalorder %s38, 3
      %p56 = por %p54, %p55
      %p57 = scmp.ne.s32.totalorder %s46, %s47
      %p58 = scmp.eq.s32.totalorder %s38, 0
      %p59 = por %p57, %p58
      %p60 = scmp.ne.s32.totalorder %s46, %s47
      %p61 = scmp.eq.s32.totalorder %s39, 3
      %p62 = por %p60, %p61
      %p64 = scmp.ne.s32.totalorder %s47, %s63
      %p65 = scmp.eq.s32.totalorder %s39, 0
      %p66 = por %p64, %p65
      %s67 = ssub.s32 %s33, %s40
      %p68 = scmp.eq.s32.totalorder %s67, 0
      %s70 = sadd.s32 %s69, 1
      %s71 = scalar_select %p68, %s69, %s70
      %p74 = pneg %p68
      %p75 = scmp.eq.s32.totalorder %s33, 3
      %p76 = por %p74, %p75
      %p77 = scmp.ne.s32.totalorder %s69, %s72
      %p78 = scmp.eq.s32.totalorder %s33, 0
      %p79 = por %p77, %p78
      %p80 = scmp.ne.s32.totalorder %s69, %s72
      %p81 = scmp.eq.s32.totalorder %s38, 3
      %p82 = por %p80, %p81
      %p83 = scmp.ne.s32.totalorder %s72, %s73
      %p84 = scmp.eq.s32.totalorder %s38, 0
      %p85 = por %p83, %p84
      %p86 = scmp.ne.s32.totalorder %s72, %s73
      %p87 = scmp.eq.s32.totalorder %s39, 3
      %p88 = por %p86, %p87
      %p90 = scmp.ne.s32.totalorder %s73, %s89
      %p91 = scmp.eq.s32.totalorder %s39, 0
      %p92 = por %p90, %p91
      %s93 = ssub.s32 %s33, %s40
      %p94 = scmp.eq.s32.totalorder %s93, 0
      %s96 = sadd.s32 %s95, 1
      %s97 = scalar_select %p94, %s95, %s96
      %p100 = pneg %p94
      %p101 = scmp.eq.s32.totalorder %s33, 3
      %p102 = por %p100, %p101
      %p103 = scmp.ne.s32.totalorder %s95, %s98
      %p104 = scmp.eq.s32.totalorder %s33, 0
      %p105 = por %p103, %p104
      %p106 = scmp.ne.s32.totalorder %s95, %s98
      %p107 = scmp.eq.s32.totalorder %s38, 3
      %p108 = por %p106, %p107
      %p109 = scmp.ne.s32.totalorder %s98, %s99
      %p110 = scmp.eq.s32.totalorder %s38, 0
      %p111 = por %p109, %p110
      %p112 = scmp.ne.s32.totalorder %s98, %s99
      %p113 = scmp.eq.s32.totalorder %s39, 3
      %p114 = por %p112, %p113
      %p116 = scmp.ne.s32.totalorder %s99, %s115
      %p117 = scmp.eq.s32.totalorder %s39, 0
      %p118 = por %p116, %p117
      %s120 = sadd.s32 %s119, 1
      %p123 = scmp.eq.s32.totalorder %s33, 3
      %p124 = scmp.ne.s32.totalorder %s119, %s121
      %p125 = scmp.eq.s32.totalorder %s33, 0
      %p126 = por %p124, %p125
      %p127 = scmp.ne.s32.totalorder %s119, %s121
      %p128 = scmp.eq.s32.totalorder %s38, 3
      %p129 = por %p127, %p128
      %p130 = scmp.ne.s32.totalorder %s121, %s122
      %p131 = scmp.eq.s32.totalorder %s38, 0
      %p132 = por %p130, %p131
      %p133 = scmp.ne.s32.totalorder %s121, %s122
      %p134 = scmp.eq.s32.totalorder %s39, 3
      %p135 = por %p133, %p134
      %p137 = scmp.ne.s32.totalorder %s122, %s136
      %p138 = scmp.eq.s32.totalorder %s39, 0
      %p139 = por %p137, %p138
      %s141 = sadd.s32 %s140, 1
      %p144 = scmp.eq.s32.totalorder %s33, 3
      %p145 = scmp.ne.s32.totalorder %s140, %s142
      %p146 = scmp.eq.s32.totalorder %s33, 0
      %p147 = por %p145, %p146
      %p148 = scmp.ne.s32.totalorder %s140, %s142
      %p149 = scmp.eq.s32.totalorder %s38, 3
      %p150 = por %p148, %p149
      %p151 = scmp.ne.s32.totalorder %s142, %s143
      %p152 = scmp.eq.s32.totalorder %s38, 0
      %p153 = por %p151, %p152
      %p154 = scmp.ne.s32.totalorder %s142, %s143
      %p155 = scmp.eq.s32.totalorder %s39, 3
      %p156 = por %p154, %p155
      %p158 = scmp.ne.s32.totalorder %s143, %s157
      %p159 = scmp.eq.s32.totalorder %s39, 0
      %p160 = por %p158, %p159
      %s162 = sadd.s32 %s161, 1
      %p165 = scmp.eq.s32.totalorder %s33, 3
      %p166 = scmp.ne.s32.totalorder %s161, %s163
      %p167 = scmp.eq.s32.totalorder %s33, 0
      %p168 = por %p166, %p167
      %p169 = scmp.ne.s32.totalorder %s161, %s163
      %p170 = scmp.eq.s32.totalorder %s38, 3
      %p171 = por %p169, %p170
      %p172 = scmp.ne.s32.totalorder %s163, %s164
      %p173 = scmp.eq.s32.totalorder %s38, 0
      %p174 = por %p172, %p173
      %p175 = scmp.ne.s32.totalorder %s163, %s164
      %p176 = scmp.eq.s32.totalorder %s39, 3
      %p177 = por %p175, %p176
      %p179 = scmp.ne.s32.totalorder %s164, %s178
      %p180 = scmp.eq.s32.totalorder %s39, 0
      %p181 = por %p179, %p180
      %s183 = sadd.s32 %s182, 1
      %p186 = scmp.eq.s32.totalorder %s33, 3
      %p187 = scmp.ne.s32.totalorder %s182, %s184
      %p188 = scmp.eq.s32.totalorder %s33, 0
      %p189 = por %p187, %p188
      %p190 = scmp.ne.s32.totalorder %s182, %s184
      %p191 = scmp.eq.s32.totalorder %s38, 3
      %p192 = por %p190, %p191
      %p193 = scmp.ne.s32.totalorder %s184, %s185
      %p194 = scmp.eq.s32.totalorder %s38, 0
      %p195 = por %p193, %p194
      %p196 = scmp.ne.s32.totalorder %s184, %s185
      %p197 = scmp.eq.s32.totalorder %s39, 3
      %p198 = por %p196, %p197
      %p200 = scmp.ne.s32.totalorder %s185, %s199
      %p201 = scmp.eq.s32.totalorder %s39, 0
      %p202 = por %p200, %p201
      %s204 = sadd.s32 %s203, 1
      %p207 = scmp.eq.s32.totalorder %s33, 3
      %p208 = scmp.ne.s32.totalorder %s203, %s205
      %p209 = scmp.eq.s32.totalorder %s33, 0
      %p210 = por %p208, %p209
      %p211 = scmp.ne.s32.totalorder %s203, %s205
      %p212 = scmp.eq.s32.totalorder %s38, 3
      %p213 = por %p211, %p212
      %p214 = scmp.ne.s32.totalorder %s205, %s206
      %p215 = scmp.eq.s32.totalorder %s38, 0
      %p216 = por %p214, %p215
      %p217 = scmp.ne.s32.totalorder %s205, %s206
      %p218 = scmp.eq.s32.totalorder %s39, 3
      %p219 = por %p217, %p218
      %p221 = scmp.ne.s32.totalorder %s206, %s220
      %p222 = scmp.eq.s32.totalorder %s39, 0
      %p223 = por %p221, %p222
      %s225 = sadd.s32 %s224, 1
      %p228 = scmp.eq.s32.totalorder %s33, 3
      %p229 = scmp.ne.s32.totalorder %s224, %s226
      %p230 = scmp.eq.s32.totalorder %s33, 0
      %p231 = por %p229, %p230
      %p232 = scmp.ne.s32.totalorder %s224, %s226
      %p233 = scmp.eq.s32.totalorder %s38, 3
      %p234 = por %p232, %p233
      %p235 = scmp.ne.s32.totalorder %s226, %s227
      %p236 = scmp.eq.s32.totalorder %s38, 0
      %p237 = por %p235, %p236
      %p238 = scmp.ne.s32.totalorder %s226, %s227
      %p239 = scmp.eq.s32.totalorder %s39, 3
      %p240 = por %p238, %p239
      %p242 = scmp.ne.s32.totalorder %s227, %s241
      %p243 = scmp.eq.s32.totalorder %s39, 0
      %p244 = por %p242, %p243
      %s245 = ssub.s32 %s33, %s40
      %p246 = scmp.eq.s32.totalorder %s245, 0
      %s248 = sadd.s32 %s247, 1
      %s249 = scalar_select %p246, %s247, %s248
      %p252 = pneg %p246
      %p253 = scmp.eq.s32.totalorder %s33, 3
      %p254 = por %p252, %p253
      %p255 = scmp.ne.s32.totalorder %s247, %s250
      %p256 = scmp.eq.s32.totalorder %s33, 0
      %p257 = por %p255, %p256
      %p258 = scmp.ne.s32.totalorder %s247, %s250
      %p259 = scmp.eq.s32.totalorder %s38, 3
      %p260 = por %p258, %p259
      %p261 = scmp.ne.s32.totalorder %s250, %s251
      %p262 = scmp.eq.s32.totalorder %s38, 0
      %p263 = por %p261, %p262
      %p264 = scmp.ne.s32.totalorder %s250, %s251
      %p265 = scmp.eq.s32.totalorder %s39, 3
      %p266 = por %p264, %p265
      %p268 = scmp.ne.s32.totalorder %s251, %s267
      %p269 = scmp.eq.s32.totalorder %s39, 0
      %p270 = por %p268, %p269
      %s271 = ssub.s32 %s33, %s40
      %p272 = scmp.eq.s32.totalorder %s271, 0
      %s274 = sadd.s32 %s273, 1
      %s275 = scalar_select %p272, %s273, %s274
      %p278 = pneg %p272
      %p279 = scmp.eq.s32.totalorder %s33, 3
      %p280 = por %p278, %p279
      %p281 = scmp.ne.s32.totalorder %s273, %s276
      %p282 = scmp.eq.s32.totalorder %s33, 0
      %p283 = por %p281, %p282
      %p284 = scmp.ne.s32.totalorder %s273, %s276
      %p285 = scmp.eq.s32.totalorder %s38, 3
      %p286 = por %p284, %p285
      %p287 = scmp.ne.s32.totalorder %s276, %s277
      %p288 = scmp.eq.s32.totalorder %s38, 0
      %p289 = por %p287, %p288
      %p290 = scmp.ne.s32.totalorder %s276, %s277
      %p291 = scmp.eq.s32.totalorder %s39, 3
      %p292 = por %p290, %p291
      %p294 = scmp.ne.s32.totalorder %s277, %s293
      %p295 = scmp.eq.s32.totalorder %s39, 0
      %p296 = por %p294, %p295
      %s297 = ssub.s32 %s33, %s40
      %p298 = scmp.eq.s32.totalorder %s297, 0
      %s300 = sadd.s32 %s299, 1
      %s301 = scalar_select %p298, %s299, %s300
      %p304 = pneg %p298
      %p305 = scmp.eq.s32.totalorder %s33, 3
      %p306 = por %p304, %p305
      %p307 = scmp.ne.s32.totalorder %s299, %s302
      %p308 = scmp.eq.s32.totalorder %s33, 0
      %p309 = por %p307, %p308
      %p310 = scmp.ne.s32.totalorder %s299, %s302
      %p311 = scmp.eq.s32.totalorder %s38, 3
      %p312 = por %p310, %p311
      %p313 = scmp.ne.s32.totalorder %s302, %s303
      %p314 = scmp.eq.s32.totalorder %s38, 0
      %p315 = por %p313, %p314
      %p316 = scmp.ne.s32.totalorder %s302, %s303
      %p317 = scmp.eq.s32.totalorder %s39, 3
      %p318 = por %p316, %p317
      %p320 = scmp.ne.s32.totalorder %s303, %s319
      %p321 = scmp.eq.s32.totalorder %s39, 0
      %p322 = por %p320, %p321
      %p323 = scmp.le.s32.totalorder 1, %s33
      %p324 = scmp.lt.s32.totalorder %s33, 5
      %p325 = pnand %p323, %p324
      %p326 = pneg %p325
      // Predicated region
      $region9: #{tpu_custom_call.1} parent=5 // pred_check
        _
      $region10: #{tpu_custom_call.1} parent=5 // pred_check_branch
        %328 = sbr.rel (%p325) target = $region12
      $region11: #{tpu_custom_call.1} parent=5 // pred_region
        %s329 = ssub.s32 %s33, 1
        // Predicated region
        $region13: #{tpu_custom_call.1} parent=11 // pred_check
          %p330 = pneg %p132
        $region14: #{tpu_custom_call.1} parent=11 // pred_check_branch
          %332 = sbr.rel (%p330) target = $region16
        $region15: #{tpu_custom_call.1} parent=11 // pred_region
          %s334 = ssub.s32 512, 512
          %335 = vsyncadd [#allocation9], %s334
          %s336 = sshll.u32 [#allocation8], 4
          %s337 = int_to_ptr.vmem [resolvable:$true] %s336
          %342 = dma.hbm_to_vmem [thread:$0]  %s3, 512, %s337, [#allocation9], 128, 128, 8
        $region16: #{tpu_custom_call.1} parent=11 // pred_fallthru
          _
        // Predicated region
        $region17: #{tpu_custom_call.1} parent=11 // pred_check
          %p343 = pneg %p153
        $region18: #{tpu_custom_call.1} parent=11 // pred_check_branch
          %345 = sbr.rel (%p343) target = $region20
        $region19: #{tpu_custom_call.1} parent=11 // pred_region
          %s347 = ssub.s32 16, 16
          %348 = vsyncadd [#allocation9], %s347
          %s350 = sshll.u32 [#allocation10], 4
          %s351 = int_to_ptr.vmem [resolvable:$true] %s350
          %353 = dma.hbm_to_vmem [thread:$0]  %s4, 16, %s351, [#allocation9]
        $region20: #{tpu_custom_call.1} parent=11 // pred_fallthru
          _
        // Predicated region
        $region21: #{tpu_custom_call.1} parent=11 // pred_check
          %p354 = pneg %p174
        $region22: #{tpu_custom_call.1} parent=11 // pred_check_branch
          %356 = sbr.rel (%p354) target = $region24
        $region23: #{tpu_custom_call.1} parent=11 // pred_region
          %s358 = ssub.s32 512, 512
          %359 = vsyncadd [#allocation12], %s358
          %s360 = sshll.u32 [#allocation11], 4
          %s361 = int_to_ptr.vmem [resolvable:$true] %s360
          %366 = dma.hbm_to_vmem [thread:$0]  %s5, 512, %s361, [#allocation12], 128, 128, 8
        $region24: #{tpu_custom_call.1} parent=11 // pred_fallthru
          _
        // Predicated region
        $region25: #{tpu_custom_call.1} parent=11 // pred_check
          %p367 = pneg %p195
        $region26: #{tpu_custom_call.1} parent=11 // pred_check_branch
          %369 = sbr.rel (%p367) target = $region28
        $region27: #{tpu_custom_call.1} parent=11 // pred_region
          %s371 = ssub.s32 16, 16
          %372 = vsyncadd [#allocation12], %s371
          %s374 = sshll.u32 [#allocation13], 4
          %s375 = int_to_ptr.vmem [resolvable:$true] %s374
          %377 = dma.hbm_to_vmem [thread:$0]  %s6, 16, %s375, [#allocation12]
        $region28: #{tpu_custom_call.1} parent=11 // pred_fallthru
          _
        // Predicated region
        $region29: #{tpu_custom_call.1} parent=11 // pred_check
          %p378 = pneg %p216
        $region30: #{tpu_custom_call.1} parent=11 // pred_check_branch
          %380 = sbr.rel (%p378) target = $region32
        $region31: #{tpu_custom_call.1} parent=11 // pred_region
          %s382 = ssub.s32 512, 512
          %383 = vsyncadd [#allocation15], %s382
          %s384 = sshll.u32 [#allocation14], 4
          %s385 = int_to_ptr.vmem [resolvable:$true] %s384
          %390 = dma.hbm_to_vmem [thread:$0]  %s7, 512, %s385, [#allocation15], 128, 128, 8
        $region32: #{tpu_custom_call.1} parent=11 // pred_fallthru
          _
        // Predicated region
        $region33: #{tpu_custom_call.1} parent=11 // pred_check
          %p391 = pneg %p237
        $region34: #{tpu_custom_call.1} parent=11 // pred_check_branch
          %393 = sbr.rel (%p391) target = $region36
        $region35: #{tpu_custom_call.1} parent=11 // pred_region
          %s395 = ssub.s32 16, 16
          %396 = vsyncadd [#allocation15], %s395
          %s398 = sshll.u32 [#allocation16], 4
          %s399 = int_to_ptr.vmem [resolvable:$true] %s398
          %401 = dma.hbm_to_vmem [thread:$0]  %s8, 16, %s399, [#allocation15]
        $region36: #{tpu_custom_call.1} parent=11 // pred_fallthru
          _
      $region12: #{tpu_custom_call.1} parent=5 // pred_fallthru
        _
      %p402 = scmp.lt.s32.totalorder %s33, 4
      // Predicated region
      $region37: #{tpu_custom_call.1} parent=5 // pred_check
        %p403 = pneg %p402
      $region38: #{tpu_custom_call.1} parent=5 // pred_check_branch
        %405 = sbr.rel (%p403) target = $region40
      $region39: #{tpu_custom_call.1} parent=5 // pred_region
        // Predicated region
        $region41: #{tpu_custom_call.1} parent=39 // pred_check
          %p406 = pneg %p53
        $region42: #{tpu_custom_call.1} parent=39 // pred_check_branch
          %408 = sbr.rel (%p406) target = $region44
        $region43: #{tpu_custom_call.1} parent=39 // pred_region
          %s409 = sand.u32 %s43, 1
          %s410 = scalar_lea.sflag [#allocation3], %s409
          %s411 = sand.u32 %s43, 1
          %s412 = smul.addr %s411, 8
          %s413 = scalar_lea.vmem [#allocation2], %s412
          %s415 = ssub.s32 128, 128
          %416 = vsyncadd %s410, %s415
          %s417 = smul.addr %s33, 128
          %s418 = scalar_lea.hbm %s0, %s417
          %s420 = sshll.u32 %s413, 4
          %s421 = int_to_ptr.vmem [resolvable:$true] %s420
          %423 = dma.hbm_to_vmem [thread:$0]  %s418, 128, %s421, %s410
        $region44: #{tpu_custom_call.1} parent=39 // pred_fallthru
          _
        // Predicated region
        $region45: #{tpu_custom_call.1} parent=39 // pred_check
          %p424 = pneg %p79
        $region46: #{tpu_custom_call.1} parent=39 // pred_check_branch
          %426 = sbr.rel (%p424) target = $region48
        $region47: #{tpu_custom_call.1} parent=39 // pred_region
          %s427 = sand.u32 %s33, 1
          %s428 = scalar_lea.sflag [#allocation6], %s427
          %s429 = sand.u32 %s69, 1
          %s430 = smul.addr %s429, 8
          %s431 = scalar_lea.vmem [#allocation5], %s430
          %s433 = ssub.s32 128, 128
          %434 = vsyncadd %s428, %s433
          %s435 = smul.addr %s33, 128
          %s436 = scalar_lea.hbm %s1, %s435
          %s438 = sshll.u32 %s431, 4
          %s439 = int_to_ptr.vmem [resolvable:$true] %s438
          %441 = dma.hbm_to_vmem [thread:$0]  %s436, 128, %s439, %s428
        $region48: #{tpu_custom_call.1} parent=39 // pred_fallthru
          _
        // Predicated region
        $region49: #{tpu_custom_call.1} parent=39 // pred_check
          %p442 = pneg %p105
        $region50: #{tpu_custom_call.1} parent=39 // pred_check_branch
          %444 = sbr.rel (%p442) target = $region52
        $region51: #{tpu_custom_call.1} parent=39 // pred_region
          %s445 = sand.u32 %s33, 1
          %s446 = scalar_lea.sflag [#allocation6], %s445
          %s447 = sand.u32 %s95, 1
          %s448 = smul.addr %s447, 8
          %s449 = scalar_lea.vmem [#allocation7], %s448
          %s451 = ssub.s32 128, 128
          %452 = vsyncadd %s446, %s451
          %s453 = smul.addr %s33, 128
          %s454 = scalar_lea.hbm %s2, %s453
          %s456 = sshll.u32 %s449, 4
          %s457 = int_to_ptr.vmem [resolvable:$true] %s456
          %459 = dma.hbm_to_vmem [thread:$0]  %s454, 128, %s457, %s446
        $region52: #{tpu_custom_call.1} parent=39 // pred_fallthru
          _
      $region40: #{tpu_custom_call.1} parent=5 // pred_fallthru
        _
      %p460 = scmp.le.s32.totalorder 1, %s33
      %p461 = scmp.lt.s32.totalorder %s33, 5
      %p462 = pnand %p460, %p461
      %p463 = pneg %p462
      // Predicated region
      $region53: #{tpu_custom_call.1} parent=5 // pred_check
        _
      $region54: #{tpu_custom_call.1} parent=5 // pred_check_branch
        %465 = sbr.rel (%p462) target = $region56
      $region55: #{tpu_custom_call.1} parent=5 // pred_region
        %s466 = ssub.s32 %s33, 1
        %s467 = sand.u32 %s46, 1
        %s468 = scalar_lea.sflag [#allocation3], %s467
        %s469 = sand.u32 %s46, 1
        %s470 = smul.addr %s469, 8
        %s471 = scalar_lea.vmem [#allocation2], %s470
        // Predicated region
        $region57: #{tpu_custom_call.1} parent=55 // pred_check
          %p472 = pneg %p59
        $region58: #{tpu_custom_call.1} parent=55 // pred_check_branch
          %474 = sbr.rel (%p472) target = $region60
        $region59: #{tpu_custom_call.1} parent=55 // pred_region
          %475 = dma.done %s468, 128
        $region60: #{tpu_custom_call.1} parent=55 // pred_fallthru
          _
        %s476 = sand.u32 %s38, 1
        %s477 = scalar_lea.sflag [#allocation6], %s476
        %s478 = sand.u32 %s72, 1
        %s479 = smul.addr %s478, 8
        %s480 = scalar_lea.vmem [#allocation5], %s479
        // Predicated region
        $region61: #{tpu_custom_call.1} parent=55 // pred_check
          %p481 = pneg %p85
        $region62: #{tpu_custom_call.1} parent=55 // pred_check_branch
          %483 = sbr.rel (%p481) target = $region64
        $region63: #{tpu_custom_call.1} parent=55 // pred_region
          %484 = dma.done %s477, 128
        $region64: #{tpu_custom_call.1} parent=55 // pred_fallthru
          _
        %s485 = sand.u32 %s38, 1
        %s486 = scalar_lea.sflag [#allocation6], %s485
        %s487 = sand.u32 %s98, 1
        %s488 = smul.addr %s487, 8
        %s489 = scalar_lea.vmem [#allocation7], %s488
        // Predicated region
        $region65: #{tpu_custom_call.1} parent=55 // pred_check
          %p490 = pneg %p111
        $region66: #{tpu_custom_call.1} parent=55 // pred_check_branch
          %492 = sbr.rel (%p490) target = $region68
        $region67: #{tpu_custom_call.1} parent=55 // pred_region
          %493 = dma.done %s486, 128
        $region68: #{tpu_custom_call.1} parent=55 // pred_fallthru
          _
        // Predicated region
        $region69: #{tpu_custom_call.1} parent=55 // pred_check
          %p494 = pneg %p132
        $region70: #{tpu_custom_call.1} parent=55 // pred_check_branch
          %496 = sbr.rel (%p494) target = $region72
        $region71: #{tpu_custom_call.1} parent=55 // pred_region
          %497 = dma.done [#allocation9], 512
        $region72: #{tpu_custom_call.1} parent=55 // pred_fallthru
          _
        // Predicated region
        $region73: #{tpu_custom_call.1} parent=55 // pred_check
          %p498 = pneg %p153
        $region74: #{tpu_custom_call.1} parent=55 // pred_check_branch
          %500 = sbr.rel (%p498) target = $region76
        $region75: #{tpu_custom_call.1} parent=55 // pred_region
          %501 = dma.done [#allocation9], 16
        $region76: #{tpu_custom_call.1} parent=55 // pred_fallthru
          _
        // Predicated region
        $region77: #{tpu_custom_call.1} parent=55 // pred_check
          %p502 = pneg %p174
        $region78: #{tpu_custom_call.1} parent=55 // pred_check_branch
          %504 = sbr.rel (%p502) target = $region80
        $region79: #{tpu_custom_call.1} parent=55 // pred_region
          %505 = dma.done [#allocation12], 512
        $region80: #{tpu_custom_call.1} parent=55 // pred_fallthru
          _
        // Predicated region
        $region81: #{tpu_custom_call.1} parent=55 // pred_check
          %p506 = pneg %p195
        $region82: #{tpu_custom_call.1} parent=55 // pred_check_branch
          %508 = sbr.rel (%p506) target = $region84
        $region83: #{tpu_custom_call.1} parent=55 // pred_region
          %509 = dma.done [#allocation12], 16
        $region84: #{tpu_custom_call.1} parent=55 // pred_fallthru
          _
        // Predicated region
        $region85: #{tpu_custom_call.1} parent=55 // pred_check
          %p510 = pneg %p216
        $region86: #{tpu_custom_call.1} parent=55 // pred_check_branch
          %512 = sbr.rel (%p510) target = $region88
        $region87: #{tpu_custom_call.1} parent=55 // pred_region
          %513 = dma.done [#allocation15], 512
        $region88: #{tpu_custom_call.1} parent=55 // pred_fallthru
          _
        // Predicated region
        $region89: #{tpu_custom_call.1} parent=55 // pred_check
          %p514 = pneg %p237
        $region90: #{tpu_custom_call.1} parent=55 // pred_check_branch
          %516 = sbr.rel (%p514) target = $region92
        $region91: #{tpu_custom_call.1} parent=55 // pred_region
          %517 = dma.done [#allocation15], 16
        $region92: #{tpu_custom_call.1} parent=55 // pred_fallthru
          _
        %s518 = sand.u32 %s46, 1
        %s519 = scalar_lea.sflag [#allocation3], %s518
        %s520 = sand.u32 %s46, 1
        %s521 = smul.addr %s520, 8
        %s522 = scalar_lea.vmem [#allocation2], %s521
        %p523 = pneg %p59
        %p524 = pneg %p56
        %s525 = sand.u32 %s38, 1
        %s526 = scalar_lea.sflag [#allocation6], %s525
        %s527 = sand.u32 %s72, 1
        %s528 = smul.addr %s527, 8
        %s529 = scalar_lea.vmem [#allocation5], %s528
        %p530 = pneg %p85
        %p531 = pneg %p82
        %s532 = sand.u32 %s38, 1
        %s533 = scalar_lea.sflag [#allocation6], %s532
        %s534 = sand.u32 %s98, 1
        %s535 = smul.addr %s534, 8
        %s536 = scalar_lea.vmem [#allocation7], %s535
        %p537 = pneg %p111
        %p538 = pneg %p108
        %p539 = pneg %p132
        %p540 = pneg %p129
        %p541 = pneg %p153
        %p542 = pneg %p150
        %p543 = pneg %p174
        %p544 = pneg %p171
        %p545 = pneg %p195
        %p546 = pneg %p192
        %p547 = pneg %p216
        %p548 = pneg %p213
        %p549 = pneg %p237
        %p550 = pneg %p234
        %p551 = pneg %p263
        %p552 = pneg %p260
        %s553 = sand.u32 %s250, 1
        %s554 = scalar_lea.sflag [#allocation4], %s553
        %s555 = sand.u32 %s250, 1
        %s556 = smul.addr %s555, 8
        %s557 = scalar_lea.vmem [#allocation17], %s556
        %p558 = pneg %p289
        %p559 = pneg %p286
        %s560 = sand.u32 %s38, 1
        %s561 = scalar_lea.sflag [#allocation19], %s560
        %s562 = sand.u32 %s276, 1
        %s563 = smul.addr %s562, 8
        %s564 = scalar_lea.vmem [#allocation18], %s563
        %p565 = pneg %p315
        %p566 = pneg %p312
        %s567 = sand.u32 %s38, 1
        %s568 = scalar_lea.sflag [#allocation19], %s567
        %s569 = sand.u32 %s302, 1
        %s570 = smul.addr %s569, 8
        %s571 = scalar_lea.vmem [#allocation20], %s570
        %v572 = vld [vmem:[%s471] sm:$0xff]
        %v573 = vld [vmem:[#allocation8] sm:$0xff]
        %v574 = vld [vmem:[#allocation8 + $0x8] sm:$0xff]
        %v575 = vld [vmem:[#allocation8 + $0x10] sm:$0xff]
        %v576 = vld [vmem:[#allocation8 + $0x18] sm:$0xff]
        %v577 = vld [vmem:[#allocation10] sm:$0x1]
        %v579 = vlaneseq
        %v580 = vshrl.u32 %v579, 7
        %v581 = vsub.s32 0, %v580
        %v582 = vrot.slane %v577, %v581
        %vm584 = vcmask 261120
        %v586 = vsel %vm584, %v572, 0
        %v589 = vsel %vm584, %v573, 0
        %v592 = vsel %vm584, %v574, 0
        %v595 = vsel %vm584, %v575, 0
        %v598 = vsel %vm584, %v576, 0
        %600 = vmatprep.subr.mxu0 0.0
        %601 = vmatpush1.xpose.msra.mxu0 %v589
        %602 = vmatprep.subr.mxu0 0.0
        %603 = vmatpush1.xpose.msra.mxu0 %v592
        %604 = vmatprep.subr.mxu0 0.0
        %605 = vmatpush1.xpose.msra.mxu0 %v595
        %606 = vmatprep.subr.mxu0 0.0
        %607 = vmatpush1.xpose.msra.mxu0 %v598
        %608 = vmatprep.subr.mxu0 0.0
        %609 = vmatpush1.xpose.msra.mxu0 0.0
        %610 = vmatprep.subr.mxu0 0.0
        %611 = vmatpush1.xpose.msra.mxu0 0.0
        %612 = vmatprep.subr.mxu0 0.0
        %613 = vmatpush1.xpose.msra.mxu0 0.0
        %614 = vmatprep.subr.mxu0 0.0
        %615 = vmatpush1.xpose.msra.mxu0 0.0
        %616 = vmatprep.subr.mxu0 0.0
        %617 = vmatpush1.xpose.msra.mxu0 0.0
        %618 = vmatprep.subr.mxu0 0.0
        %619 = vmatpush1.xpose.msra.mxu0 0.0
        %620 = vmatprep.subr.mxu0 0.0
        %621 = vmatpush1.xpose.msra.mxu0 0.0
        %622 = vmatprep.subr.mxu0 0.0
        %623 = vmatpush1.xpose.msra.mxu0 0.0
        %624 = vmatprep.subr.mxu0 0.0
        %625 = vmatpush1.xpose.msra.mxu0 0.0
        %626 = vmatprep.subr.mxu0 0.0
        %627 = vmatpush1.xpose.msra.mxu0 0.0
        %628 = vmatprep.subr.mxu0 0.0
        %629 = vmatpush1.xpose.msra.mxu0 0.0
        %630 = vmatprep.subr.mxu0 0.0
        %631 = vmatpush1.xpose.msra.mxu0 0.0
        %632 = vmatprep.subr.mxu0 0.0
        %633 = vmatpush1.xpose.msra.mxu0 0.0
        %634 = vmatprep.subr.mxu0 0.0
        %635 = vmatpush1.xpose.msra.mxu0 0.0
        %636 = vmatprep.subr.mxu0 0.0
        %637 = vmatpush1.xpose.msra.mxu0 0.0
        %638 = vmatprep.subr.mxu0 0.0
        %639 = vmatpush1.xpose.msra.mxu0 0.0
        %640 = vmatprep.subr.mxu0 0.0
        %641 = vmatpush1.xpose.msra.mxu0 0.0
        %642 = vmatprep.subr.mxu0 0.0
        %643 = vmatpush1.xpose.msra.mxu0 0.0
        %644 = vmatprep.subr.mxu0 0.0
        %645 = vmatpush1.xpose.msra.mxu0 0.0
        %646 = vmatprep.subr.mxu0 0.0
        %647 = vmatpush1.xpose.msra.mxu0 0.0
        %648 = vmatprep.subr.mxu0 0.0
        %649 = vmatpush1.xpose.msra.mxu0 0.0
        %650 = vmatprep.subr.mxu0 0.0
        %651 = vmatpush1.xpose.msra.mxu0 0.0
        %652 = vmatprep.subr.mxu0 0.0
        %653 = vmatpush1.xpose.msra.mxu0 0.0
        %654 = vmatprep.subr.mxu0 0.0
        %655 = vmatpush1.xpose.msra.mxu0 0.0
        %656 = vmatprep.subr.mxu0 0.0
        %657 = vmatpush1.xpose.msra.mxu0 0.0
        %658 = vmatprep.subr.mxu0 0.0
        %659 = vmatpush1.xpose.msra.mxu0 0.0
        %660 = vmatprep.subr.mxu0 0.0
        %661 = vmatpush1.xpose.msra.mxu0 0.0
        %662 = vmatprep.subr.mxu0 0.0
        %663 = vmatpush1.xpose.msra.mxu0 0.0
        %664 = vmatprep.mubr.f32.mxu0 0.0
        %665 = vmatmul.mubr.f32.gmra.mrb[0].mxu0 %v586
        %v666 = vpop.f32.mrb[0].mxu0
        %v667 = vadd.f32 %v582, %v666
        %v668 = vpop.f32.mrb[0].mxu0
        %669 = vdwg.mxu0
        %v670 = vmul.f32 %v667, 0.35355338
        %671 = vst.msk [vmem:[%s557] sm:$0xff] %vm584, %v670
        %v672 = vld [vmem:[%s480] sm:$0xff]
        %v673 = vld [vmem:[#allocation11] sm:$0xff]
        %v674 = vld [vmem:[#allocation11 + $0x8] sm:$0xff]
        %v675 = vld [vmem:[#allocation11 + $0x10] sm:$0xff]
        %v676 = vld [vmem:[#allocation11 + $0x18] sm:$0xff]
        %v677 = vld [vmem:[#allocation13] sm:$0x1]
        %v679 = vlaneseq
        %v680 = vshrl.u32 %v679, 7
        %v681 = vsub.s32 0, %v680
        %v682 = vrot.slane %v677, %v681
        %v685 = vsel %vm584, %v672, 0
        %v688 = vsel %vm584, %v673, 0
        %v691 = vsel %vm584, %v674, 0
        %v694 = vsel %vm584, %v675, 0
        %v697 = vsel %vm584, %v676, 0
        %699 = vmatprep.subr.mxu0 0.0
        %700 = vmatpush1.xpose.msra.mxu0 %v688
        %701 = vmatprep.subr.mxu0 0.0
        %702 = vmatpush1.xpose.msra.mxu0 %v691
        %703 = vmatprep.subr.mxu0 0.0
        %704 = vmatpush1.xpose.msra.mxu0 %v694
        %705 = vmatprep.subr.mxu0 0.0
        %706 = vmatpush1.xpose.msra.mxu0 %v697
        %707 = vmatprep.subr.mxu0 0.0
        %708 = vmatpush1.xpose.msra.mxu0 0.0
        %709 = vmatprep.subr.mxu0 0.0
        %710 = vmatpush1.xpose.msra.mxu0 0.0
        %711 = vmatprep.subr.mxu0 0.0
        %712 = vmatpush1.xpose.msra.mxu0 0.0
        %713 = vmatprep.subr.mxu0 0.0
        %714 = vmatpush1.xpose.msra.mxu0 0.0
        %715 = vmatprep.subr.mxu0 0.0
        %716 = vmatpush1.xpose.msra.mxu0 0.0
        %717 = vmatprep.subr.mxu0 0.0
        %718 = vmatpush1.xpose.msra.mxu0 0.0
        %719 = vmatprep.subr.mxu0 0.0
        %720 = vmatpush1.xpose.msra.mxu0 0.0
        %721 = vmatprep.subr.mxu0 0.0
        %722 = vmatpush1.xpose.msra.mxu0 0.0
        %723 = vmatprep.subr.mxu0 0.0
        %724 = vmatpush1.xpose.msra.mxu0 0.0
        %725 = vmatprep.subr.mxu0 0.0
        %726 = vmatpush1.xpose.msra.mxu0 0.0
        %727 = vmatprep.subr.mxu0 0.0
        %728 = vmatpush1.xpose.msra.mxu0 0.0
        %729 = vmatprep.subr.mxu0 0.0
        %730 = vmatpush1.xpose.msra.mxu0 0.0
        %731 = vmatprep.subr.mxu0 0.0
        %732 = vmatpush1.xpose.msra.mxu0 0.0
        %733 = vmatprep.subr.mxu0 0.0
        %734 = vmatpush1.xpose.msra.mxu0 0.0
        %735 = vmatprep.subr.mxu0 0.0
        %736 = vmatpush1.xpose.msra.mxu0 0.0
        %737 = vmatprep.subr.mxu0 0.0
        %738 = vmatpush1.xpose.msra.mxu0 0.0
        %739 = vmatprep.subr.mxu0 0.0
        %740 = vmatpush1.xpose.msra.mxu0 0.0
        %741 = vmatprep.subr.mxu0 0.0
        %742 = vmatpush1.xpose.msra.mxu0 0.0
        %743 = vmatprep.subr.mxu0 0.0
        %744 = vmatpush1.xpose.msra.mxu0 0.0
        %745 = vmatprep.subr.mxu0 0.0
        %746 = vmatpush1.xpose.msra.mxu0 0.0
        %747 = vmatprep.subr.mxu0 0.0
        %748 = vmatpush1.xpose.msra.mxu0 0.0
        %749 = vmatprep.subr.mxu0 0.0
        %750 = vmatpush1.xpose.msra.mxu0 0.0
        %751 = vmatprep.subr.mxu0 0.0
        %752 = vmatpush1.xpose.msra.mxu0 0.0
        %753 = vmatprep.subr.mxu0 0.0
        %754 = vmatpush1.xpose.msra.mxu0 0.0
        %755 = vmatprep.subr.mxu0 0.0
        %756 = vmatpush1.xpose.msra.mxu0 0.0
        %757 = vmatprep.subr.mxu0 0.0
        %758 = vmatpush1.xpose.msra.mxu0 0.0
        %759 = vmatprep.subr.mxu0 0.0
        %760 = vmatpush1.xpose.msra.mxu0 0.0
        %761 = vmatprep.subr.mxu0 0.0
        %762 = vmatpush1.xpose.msra.mxu0 0.0
        %763 = vmatprep.mubr.f32.mxu0 0.0
        %764 = vmatmul.mubr.f32.gmra.mrb[0].mxu0 %v685
        %v765 = vpop.f32.mrb[0].mxu0
        %v766 = vadd.f32 %v682, %v765
        %v767 = vpop.f32.mrb[0].mxu0
        %768 = vdwg.mxu0
        %769 = vst.msk [vmem:[%s564] sm:$0xff] %vm584, %v766
        %v770 = vld [vmem:[%s489] sm:$0xff]
        %v771 = vld [vmem:[#allocation14] sm:$0xff]
        %v772 = vld [vmem:[#allocation14 + $0x8] sm:$0xff]
        %v773 = vld [vmem:[#allocation14 + $0x10] sm:$0xff]
        %v774 = vld [vmem:[#allocation14 + $0x18] sm:$0xff]
        %v775 = vld [vmem:[#allocation16] sm:$0x1]
        %v777 = vlaneseq
        %v778 = vshrl.u32 %v777, 7
        %v779 = vsub.s32 0, %v778
        %v780 = vrot.slane %v775, %v779
        %v783 = vsel %vm584, %v770, 0
        %v786 = vsel %vm584, %v771, 0
        %v789 = vsel %vm584, %v772, 0
        %v792 = vsel %vm584, %v773, 0
        %v795 = vsel %vm584, %v774, 0
        %797 = vmatprep.subr.mxu0 0.0
        %798 = vmatpush1.xpose.msra.mxu0 %v786
        %799 = vmatprep.subr.mxu0 0.0
        %800 = vmatpush1.xpose.msra.mxu0 %v789
        %801 = vmatprep.subr.mxu0 0.0
        %802 = vmatpush1.xpose.msra.mxu0 %v792
        %803 = vmatprep.subr.mxu0 0.0
        %804 = vmatpush1.xpose.msra.mxu0 %v795
        %805 = vmatprep.subr.mxu0 0.0
        %806 = vmatpush1.xpose.msra.mxu0 0.0
        %807 = vmatprep.subr.mxu0 0.0
        %808 = vmatpush1.xpose.msra.mxu0 0.0
        %809 = vmatprep.subr.mxu0 0.0
        %810 = vmatpush1.xpose.msra.mxu0 0.0
        %811 = vmatprep.subr.mxu0 0.0
        %812 = vmatpush1.xpose.msra.mxu0 0.0
        %813 = vmatprep.subr.mxu0 0.0
        %814 = vmatpush1.xpose.msra.mxu0 0.0
        %815 = vmatprep.subr.mxu0 0.0
        %816 = vmatpush1.xpose.msra.mxu0 0.0
        %817 = vmatprep.subr.mxu0 0.0
        %818 = vmatpush1.xpose.msra.mxu0 0.0
        %819 = vmatprep.subr.mxu0 0.0
        %820 = vmatpush1.xpose.msra.mxu0 0.0
        %821 = vmatprep.subr.mxu0 0.0
        %822 = vmatpush1.xpose.msra.mxu0 0.0
        %823 = vmatprep.subr.mxu0 0.0
        %824 = vmatpush1.xpose.msra.mxu0 0.0
        %825 = vmatprep.subr.mxu0 0.0
        %826 = vmatpush1.xpose.msra.mxu0 0.0
        %827 = vmatprep.subr.mxu0 0.0
        %828 = vmatpush1.xpose.msra.mxu0 0.0
        %829 = vmatprep.subr.mxu0 0.0
        %830 = vmatpush1.xpose.msra.mxu0 0.0
        %831 = vmatprep.subr.mxu0 0.0
        %832 = vmatpush1.xpose.msra.mxu0 0.0
        %833 = vmatprep.subr.mxu0 0.0
        %834 = vmatpush1.xpose.msra.mxu0 0.0
        %835 = vmatprep.subr.mxu0 0.0
        %836 = vmatpush1.xpose.msra.mxu0 0.0
        %837 = vmatprep.subr.mxu0 0.0
        %838 = vmatpush1.xpose.msra.mxu0 0.0
        %839 = vmatprep.subr.mxu0 0.0
        %840 = vmatpush1.xpose.msra.mxu0 0.0
        %841 = vmatprep.subr.mxu0 0.0
        %842 = vmatpush1.xpose.msra.mxu0 0.0
        %843 = vmatprep.subr.mxu0 0.0
        %844 = vmatpush1.xpose.msra.mxu0 0.0
        %845 = vmatprep.subr.mxu0 0.0
        %846 = vmatpush1.xpose.msra.mxu0 0.0
        %847 = vmatprep.subr.mxu0 0.0
        %848 = vmatpush1.xpose.msra.mxu0 0.0
        %849 = vmatprep.subr.mxu0 0.0
        %850 = vmatpush1.xpose.msra.mxu0 0.0
        %851 = vmatprep.subr.mxu0 0.0
        %852 = vmatpush1.xpose.msra.mxu0 0.0
        %853 = vmatprep.subr.mxu0 0.0
        %854 = vmatpush1.xpose.msra.mxu0 0.0
        %855 = vmatprep.subr.mxu0 0.0
        %856 = vmatpush1.xpose.msra.mxu0 0.0
        %857 = vmatprep.subr.mxu0 0.0
        %858 = vmatpush1.xpose.msra.mxu0 0.0
        %859 = vmatprep.subr.mxu0 0.0
        %860 = vmatpush1.xpose.msra.mxu0 0.0
        %861 = vmatprep.mubr.f32.mxu0 0.0
        %862 = vmatmul.mubr.f32.gmra.mrb[0].mxu0 %v783
        %v863 = vpop.f32.mrb[0].mxu0
        %v864 = vadd.f32 %v780, %v863
        %v865 = vpop.f32.mrb[0].mxu0
        %866 = vdwg.mxu0
        %867 = vst.msk [vmem:[%s571] sm:$0xff] %vm584, %v864
        %s868 = sand.u32 %s250, 1
        %s869 = scalar_lea.sflag [#allocation4], %s868
        %s870 = sand.u32 %s250, 1
        %s871 = smul.addr %s870, 8
        %s872 = scalar_lea.vmem [#allocation17], %s871
        %s873 = sand.u32 %s38, 1
        %s874 = scalar_lea.sflag [#allocation19], %s873
        %s875 = sand.u32 %s276, 1
        %s876 = smul.addr %s875, 8
        %s877 = scalar_lea.vmem [#allocation18], %s876
        %s878 = sand.u32 %s38, 1
        %s879 = scalar_lea.sflag [#allocation19], %s878
        %s880 = sand.u32 %s302, 1
        %s881 = smul.addr %s880, 8
        %s882 = scalar_lea.vmem [#allocation20], %s881
        // Predicated region
        $region93: #{tpu_custom_call.1} parent=55 // pred_check
          %p883 = pneg %p260
        $region94: #{tpu_custom_call.1} parent=55 // pred_check_branch
          %885 = sbr.rel (%p883) target = $region96
        $region95: #{tpu_custom_call.1} parent=55 // pred_region
          %s887 = ssub.s32 128, 128
          %888 = vsyncadd %s869, %s887
          %s889 = smul.addr %s38, 128
          %s890 = scalar_lea.hbm %s9, %s889
          %s892 = sshll.u32 %s872, 4
          %s893 = int_to_ptr.vmem [resolvable:$true] %s892
          %895 = dma.vmem_to_hbm [thread:$0]  %s893, 128, %s890, %s869
        $region96: #{tpu_custom_call.1} parent=55 // pred_fallthru
          _
        // Predicated region
        $region97: #{tpu_custom_call.1} parent=55 // pred_check
          %p896 = pneg %p286
        $region98: #{tpu_custom_call.1} parent=55 // pred_check_branch
          %898 = sbr.rel (%p896) target = $region100
        $region99: #{tpu_custom_call.1} parent=55 // pred_region
          %s900 = ssub.s32 128, 128
          %901 = vsyncadd %s874, %s900
          %s902 = smul.addr %s38, 128
          %s903 = scalar_lea.hbm %s10, %s902
          %s905 = sshll.u32 %s877, 4
          %s906 = int_to_ptr.vmem [resolvable:$true] %s905
          %908 = dma.vmem_to_hbm [thread:$0]  %s906, 128, %s903, %s874
        $region100: #{tpu_custom_call.1} parent=55 // pred_fallthru
          _
        // Predicated region
        $region101: #{tpu_custom_call.1} parent=55 // pred_check
          %p909 = pneg %p312
        $region102: #{tpu_custom_call.1} parent=55 // pred_check_branch
          %911 = sbr.rel (%p909) target = $region104
        $region103: #{tpu_custom_call.1} parent=55 // pred_region
          %s913 = ssub.s32 128, 128
          %914 = vsyncadd %s879, %s913
          %s915 = smul.addr %s38, 128
          %s916 = scalar_lea.hbm %s11, %s915
          %s918 = sshll.u32 %s882, 4
          %s919 = int_to_ptr.vmem [resolvable:$true] %s918
          %921 = dma.vmem_to_hbm [thread:$0]  %s919, 128, %s916, %s879
        $region104: #{tpu_custom_call.1} parent=55 // pred_fallthru
          _
      $region56: #{tpu_custom_call.1} parent=5 // pred_fallthru
        _
      %p922 = scmp.le.s32.totalorder 2, %s33
      // Predicated region
      $region105: #{tpu_custom_call.1} parent=5 // pred_check
        %p923 = pneg %p922
      $region106: #{tpu_custom_call.1} parent=5 // pred_check_branch
        %925 = sbr.rel (%p923) target = $region108
      $region107: #{tpu_custom_call.1} parent=5 // pred_region
        %s926 = ssub.s32 %s33, 2
        // Predicated region
        $region109: #{tpu_custom_call.1} parent=107 // pred_check
          %p927 = pneg %p266
        $region110: #{tpu_custom_call.1} parent=107 // pred_check_branch
          %929 = sbr.rel (%p927) target = $region112
        $region111: #{tpu_custom_call.1} parent=107 // pred_region
          %s930 = sand.u32 %s251, 1
          %s931 = scalar_lea.sflag [#allocation4], %s930
          %s932 = sand.u32 %s251, 1
          %s933 = smul.addr %s932, 8
          %s934 = scalar_lea.vmem [#allocation17], %s933
          %935 = dma.done %s931, 128
        $region112: #{tpu_custom_call.1} parent=107 // pred_fallthru
          _
        // Predicated region
        $region113: #{tpu_custom_call.1} parent=107 // pred_check
          %p936 = pneg %p292
        $region114: #{tpu_custom_call.1} parent=107 // pred_check_branch
          %938 = sbr.rel (%p936) target = $region116
        $region115: #{tpu_custom_call.1} parent=107 // pred_region
          %s939 = sand.u32 %s39, 1
          %s940 = scalar_lea.sflag [#allocation19], %s939
          %s941 = sand.u32 %s277, 1
          %s942 = smul.addr %s941, 8
          %s943 = scalar_lea.vmem [#allocation18], %s942
          %944 = dma.done %s940, 128
        $region116: #{tpu_custom_call.1} parent=107 // pred_fallthru
          _
        // Predicated region
        $region117: #{tpu_custom_call.1} parent=107 // pred_check
          %p945 = pneg %p318
        $region118: #{tpu_custom_call.1} parent=107 // pred_check_branch
          %947 = sbr.rel (%p945) target = $region120
        $region119: #{tpu_custom_call.1} parent=107 // pred_region
          %s948 = sand.u32 %s39, 1
          %s949 = scalar_lea.sflag [#allocation19], %s948
          %s950 = sand.u32 %s303, 1
          %s951 = smul.addr %s950, 8
          %s952 = scalar_lea.vmem [#allocation20], %s951
          %953 = dma.done %s949, 128
        $region120: #{tpu_custom_call.1} parent=107 // pred_fallthru
          _
      $region108: #{tpu_custom_call.1} parent=5 // pred_fallthru
        _
    $region6: #{tpu_custom_call.1} parent=1 // loop_footer
      %s37 = sadd.s32 1, %s33
    $region7: #{tpu_custom_call.1} parent=1 // loop_footer_branch
      %32 = sbr.rel target = $region3
    $region8: #{tpu_custom_call.1} parent=1 // loop_exit
      _
    %954 = vsyncpa [#allocation3], 1
    %s955 = scalar_lea.sflag [#allocation3], 1
    %956 = vsyncpa %s955, 1
    %957 = vsyncpa [#allocation6], 1
    %s958 = scalar_lea.sflag [#allocation6], 1
    %959 = vsyncpa %s958, 1
    %960 = vsyncpa [#allocation9], 1
    %961 = vsyncpa [#allocation12], 1
    %962 = vsyncpa [#allocation15], 1
    %963 = vsyncpa [#allocation4], 1
    %s964 = scalar_lea.sflag [#allocation4], 1
    %965 = vsyncpa %s964, 1
    %966 = vsyncpa [#allocation19], 1
    %s967 = scalar_lea.sflag [#allocation19], 1
    %968 = vsyncpa %s967, 1

</llo_original>
